<compile_context>
chip_gen: v7x
topology: tpu7x:2x2x1
jax: 0.10.0
libtpu: 0.0.40
codegen_flags: <defaults>
</compile_context>

<pallas_src>
import jax
import jax.numpy as jnp
from jax.experimental import pallas as pl
from jax.experimental.pallas import tpu as pltpu


def _conv1d_tanh_kernel(x_ref, w_ref, b_ref, o_ref):
    """tanh(conv1d(x)) for one batch tile, 'same' padding handled in-kernel.

    x_ref: (B_tile, C_in, L)   f32  un-padded activations (NCL)
    w_ref: (K, C_out, C_in)    f32  per-tap weight matrices
    b_ref: (C_out, 1)          f32  bias
    o_ref: (B_tile, C_out, L)  f32  output tile (NCL)
    """
    B_tile, C_in, L = x_ref.shape
    K, C_out, _ = w_ref.shape
    pad = (K - 1) // 2

    b = b_ref[...]                               # (C_out, 1), grid-invariant
    w_taps = [w_ref[k] for k in range(K)]        # K tiny (C_out, C_in) tiles

    # K accumulated MXU matmuls per batch element.  Tap k contributes
    # dot(w_k, x) shifted by (k - pad) output columns; columns falling outside
    # the 'same'-padding window are zeroed.  This replaces both the wrapper
    # zero-pad (extra HBM pass) and the im2col concat of the previous version.
    for bi in range(B_tile):                     # B_tile is small & static (<= 8)
        xb = x_ref[bi]                           # (C_in, L) raw tile feeds the MXU
        acc = jnp.zeros((C_out, L), jnp.float32)
        for k in range(K):
            y = jnp.dot(w_taps[k], xb, preferred_element_type=jnp.float32)
            s = k - pad                          # output-column shift of this tap
            if s > 0:
                y = jnp.concatenate(
                    [y[:, s:], jnp.zeros((C_out, s), jnp.float32)], axis=1)
            elif s < 0:
                y = jnp.concatenate(
                    [jnp.zeros((C_out, -s), jnp.float32), y[:, :L + s]], axis=1)
            acc = acc + y
        o_ref[bi] = jnp.tanh(acc + b).astype(o_ref.dtype)


def _pick_batch_tile(B, C_in, C_out, L, *, cap=8, budget_bytes=12 * 1024 * 1024):
    """Largest divisor of B that is <= cap and fits the double-buffered VMEM budget."""
    for bt in range(min(B, cap), 0, -1):
        if B % bt:
            continue
        # 2x double-buffered f32 input block + 2x f32 output block.
        block_bytes = 2 * bt * (C_in + C_out) * L * 4
        if block_bytes <= budget_bytes:
            return bt
    return 1


def cnn_forward(x_ncl, weight, bias, conv_width):
    """tanh(Conv1d(x)) with 'same' padding (odd conv_width), PyTorch NCL layout.

    x_ncl:  (B, C_in, L)
    weight: (C_out, C_in, K)   -- PyTorch Conv1d weight layout
    bias:   (C_out,)
    returns (B, C_out, L), float32
    """
    B, C_in, L = x_ncl.shape
    C_out, C_in_w, K = weight.shape
    assert C_in_w == C_in
    assert K == conv_width and K % 2 == 1, "'same' padding math assumes odd conv_width"

    # Only tiny parameter reshapes in the wrapper; activations go to the kernel
    # untouched (no pad, no cast -> no extra HBM pass of the big array).
    x = x_ncl.astype(jnp.float32)
    w_taps = jnp.transpose(weight, (2, 0, 1)).astype(jnp.float32)   # (K, C_out, C_in)
    b2d = bias.reshape(C_out, 1).astype(jnp.float32)

    B_tile = _pick_batch_tile(B, C_in, C_out, L)
    grid = (B // B_tile,)

    cost = pl.CostEstimate(
        flops=2 * B * C_out * C_in * K * L,
        transcendentals=B * C_out * L,
        bytes_accessed=4 * (B * C_in * L + K * C_out * C_in + C_out + B * C_out * L),
    )

    return pl.pallas_call(
        _conv1d_tanh_kernel,
        out_shape=jax.ShapeDtypeStruct((B, C_out, L), jnp.float32),
        grid_spec=pltpu.PrefetchScalarGridSpec(
            num_scalar_prefetch=0,
            grid=grid,
            in_specs=[
                pl.BlockSpec((B_tile, C_in, L), lambda i: (i, 0, 0)),
                pl.BlockSpec((K, C_out, C_in), lambda i: (0, 0, 0)),   # grid-invariant
                pl.BlockSpec((C_out, 1), lambda i: (0, 0)),            # grid-invariant
            ],
            out_specs=pl.BlockSpec((B_tile, C_out, L), lambda i: (i, 0, 0)),
        ),
        compiler_params=pltpu.CompilerParams(
            dimension_semantics=("parallel",),
            vmem_limit_bytes=32 * 1024 * 1024,
        ),
        cost_estimate=cost,
    )(x, w_taps, b2d)


if __name__ == "__main__":
    # Module hyperparameters (synthetic, small).
    embedding_dim = 32   # C_in
    output_size = 16     # C_out
    conv_width = 3       # K (odd -> 'same' padding)
    batch = 2
    seq_len = 16

    key = jax.random.PRNGKey(0)
    kx, kw, kb = jax.random.split(key, 3)

    # Deterministic parameter init (uniform, same bounds as PyTorch Conv1d default).
    fan_in = embedding_dim * conv_width
    bound = 1.0 / (fan_in ** 0.5)
    weight = jax.random.uniform(kw, (output_size, embedding_dim, conv_width),
                                jnp.float32, -bound, bound)
    bias = jax.random.uniform(kb, (output_size,), jnp.float32, -bound, bound)

    # Input in PyTorch NCL layout: (batch, embedding_dim, seq_len).
    x = jax.random.normal(kx, (batch, embedding_dim, seq_len), jnp.float32)

    out = cnn_forward(x, weight, bias, conv_width)
    out = jax.block_until_ready(out)

    # Pure-JAX f32 reference of tanh(Conv1d(x)) with 'same' padding.
    pad = (conv_width - 1) // 2
    x_pad = jnp.pad(x, ((0, 0), (0, 0), (pad, pad)))
    ref = jnp.zeros((batch, output_size, seq_len), jnp.float32)
    for k in range(conv_width):
        ref = ref + jnp.einsum("bcl,oc->bol",
                               x_pad[:, :, k:k + seq_len], weight[:, :, k])
    ref = jnp.tanh(ref + bias[None, :, None])

    assert out.shape == (batch, output_size, seq_len)
    # MXU default precision may evaluate f32 matmuls with bf16 passes; 1e-2 is
    # ~10x above that noise floor and ~100x below any structural-bug signal.
    assert jnp.allclose(out, ref, atol=1e-2, rtol=1e-2), \
        float(jnp.max(jnp.abs(out - ref)))
    print("KERNEL_OK")
</pallas_src>

<mosaic_0001>
module attributes {stable_mosaic.version = 11 : i64} {
  func.func @_conv1d_tanh_kernel(%arg0: i32, %arg1: memref<2x32x16xf32, #tpu.memory_space<vmem>>, %arg2: memref<3x16x32xf32, #tpu.memory_space<vmem>>, %arg3: memref<16x1xf32, #tpu.memory_space<vmem>>, %arg4: memref<2x16x16xf32, #tpu.memory_space<vmem>>) attributes {dimension_semantics = [#tpu.dimension_semantics<parallel>], iteration_bounds = array<i64: 1>, scalar_prefetch = 0 : i64, scratch_operands = 0 : i64, tpu.core_type = #tpu.core_type<tc>, window_params = [{transform_indices = @transform_0, window_bounds = array<i64: 2, 32, 16>}, {pipeline_mode = #tpu.pipeline_mode<synchronous>, transform_indices = @transform_1, window_bounds = array<i64: 3, 16, 32>}, {pipeline_mode = #tpu.pipeline_mode<synchronous>, transform_indices = @transform_2, window_bounds = array<i64: 16, 1>}, {transform_indices = @transform_3, window_bounds = array<i64: 2, 16, 16>}]} {
    %c0 = arith.constant 0 : index
    %c0_0 = arith.constant 0 : index
    %0 = vector.load %arg3[%c0, %c0_0] : memref<16x1xf32, #tpu.memory_space<vmem>>, vector<16x1xf32>
    %c0_1 = arith.constant 0 : index
    %c0_2 = arith.constant 0 : index
    %c0_3 = arith.constant 0 : index
    %1 = vector.load %arg2[%c0_1, %c0_2, %c0_3] : memref<3x16x32xf32, #tpu.memory_space<vmem>>, vector<1x16x32xf32>
    %2 = vector.shape_cast %1 : vector<1x16x32xf32> to vector<16x32xf32>
    %c1 = arith.constant 1 : index
    %c0_4 = arith.constant 0 : index
    %c0_5 = arith.constant 0 : index
    %3 = vector.load %arg2[%c1, %c0_4, %c0_5] : memref<3x16x32xf32, #tpu.memory_space<vmem>>, vector<1x16x32xf32>
    %4 = vector.shape_cast %3 : vector<1x16x32xf32> to vector<16x32xf32>
    %c2 = arith.constant 2 : index
    %c0_6 = arith.constant 0 : index
    %c0_7 = arith.constant 0 : index
    %5 = vector.load %arg2[%c2, %c0_6, %c0_7] : memref<3x16x32xf32, #tpu.memory_space<vmem>>, vector<1x16x32xf32>
    %6 = vector.shape_cast %5 : vector<1x16x32xf32> to vector<16x32xf32>
    %c0_8 = arith.constant 0 : index
    %c0_9 = arith.constant 0 : index
    %c0_10 = arith.constant 0 : index
    %7 = vector.load %arg1[%c0_8, %c0_9, %c0_10] : memref<2x32x16xf32, #tpu.memory_space<vmem>>, vector<1x32x16xf32>
    %8 = vector.shape_cast %7 : vector<1x32x16xf32> to vector<32x16xf32>
    %cst = arith.constant 0.000000e+00 : f32
    %9 = vector.broadcast %cst : f32 to vector<16x16xf32>
    %cst_11 = arith.constant dense<0.000000e+00> : vector<16x16xf32>
    %10 = tpu.matmul %2, %8, %cst_11 {dimension_numbers = #tpu.dot_dimension_numbers<[1], [0], [0], [1], [0, 0, 1, 1], [], []>} : vector<16x32xf32>, vector<32x16xf32>, vector<16x16xf32> -> vector<16x16xf32>
    %cst_12 = arith.constant 0.000000e+00 : f32
    %11 = vector.broadcast %cst_12 : f32 to vector<16x1xf32>
    %12 = vector.extract_strided_slice %10 {offsets = [0, 0], sizes = [16, 15], strides = [1, 1]} : vector<16x16xf32> to vector<16x15xf32>
    %13 = tpu.concatenate %11, %12 in 1 : vector<16x1xf32>, vector<16x15xf32> -> vector<16x16xf32>
    %14 = arith.addf %9, %13 : vector<16x16xf32>
    %cst_13 = arith.constant dense<0.000000e+00> : vector<16x16xf32>
    %15 = tpu.matmul %4, %8, %cst_13 {dimension_numbers = #tpu.dot_dimension_numbers<[1], [0], [0], [1], [0, 0, 1, 1], [], []>} : vector<16x32xf32>, vector<32x16xf32>, vector<16x16xf32> -> vector<16x16xf32>
    %16 = arith.addf %14, %15 : vector<16x16xf32>
    %cst_14 = arith.constant dense<0.000000e+00> : vector<16x16xf32>
    %17 = tpu.matmul %6, %8, %cst_14 {dimension_numbers = #tpu.dot_dimension_numbers<[1], [0], [0], [1], [0, 0, 1, 1], [], []>} : vector<16x32xf32>, vector<32x16xf32>, vector<16x16xf32> -> vector<16x16xf32>
    %18 = vector.extract_strided_slice %17 {offsets = [0, 1], sizes = [16, 15], strides = [1, 1]} : vector<16x16xf32> to vector<16x15xf32>
    %cst_15 = arith.constant 0.000000e+00 : f32
    %19 = vector.broadcast %cst_15 : f32 to vector<16x1xf32>
    %20 = tpu.concatenate %18, %19 in 1 : vector<16x15xf32>, vector<16x1xf32> -> vector<16x16xf32>
    %21 = arith.addf %16, %20 : vector<16x16xf32>
    %22 = vector.broadcast %0 : vector<16x1xf32> to vector<16x16xf32>
    %23 = arith.addf %21, %22 : vector<16x16xf32>
    %24 = math.tanh %23 : vector<16x16xf32>
    %c0_16 = arith.constant 0 : index
    %c0_17 = arith.constant 0 : index
    %c0_18 = arith.constant 0 : index
    %25 = vector.load %arg4[%c0_16, %c0_17, %c0_18] : memref<2x16x16xf32, #tpu.memory_space<vmem>>, vector<1x16x16xf32>
    %26 = vector.shape_cast %25 : vector<1x16x16xf32> to vector<16x16xf32>
    %27 = vector.shape_cast %24 : vector<16x16xf32> to vector<1x16x16xf32>
    tpu.vector_store %arg4[%c0_16, %c0_17, %c0_18], %27 {strides = array<i32>} : memref<2x16x16xf32, #tpu.memory_space<vmem>>, vector<1x16x16xf32>,
    %c1_19 = arith.constant 1 : index
    %c0_20 = arith.constant 0 : index
    %c0_21 = arith.constant 0 : index
    %28 = vector.load %arg1[%c1_19, %c0_20, %c0_21] : memref<2x32x16xf32, #tpu.memory_space<vmem>>, vector<1x32x16xf32>
    %29 = vector.shape_cast %28 : vector<1x32x16xf32> to vector<32x16xf32>
    %cst_22 = arith.constant 0.000000e+00 : f32
    %30 = vector.broadcast %cst_22 : f32 to vector<16x16xf32>
    %cst_23 = arith.constant dense<0.000000e+00> : vector<16x16xf32>
    %31 = tpu.matmul %2, %29, %cst_23 {dimension_numbers = #tpu.dot_dimension_numbers<[1], [0], [0], [1], [0, 0, 1, 1], [], []>} : vector<16x32xf32>, vector<32x16xf32>, vector<16x16xf32> -> vector<16x16xf32>
    %cst_24 = arith.constant 0.000000e+00 : f32
    %32 = vector.broadcast %cst_24 : f32 to vector<16x1xf32>
    %33 = vector.extract_strided_slice %31 {offsets = [0, 0], sizes = [16, 15], strides = [1, 1]} : vector<16x16xf32> to vector<16x15xf32>
    %34 = tpu.concatenate %32, %33 in 1 : vector<16x1xf32>, vector<16x15xf32> -> vector<16x16xf32>
    %35 = arith.addf %30, %34 : vector<16x16xf32>
    %cst_25 = arith.constant dense<0.000000e+00> : vector<16x16xf32>
    %36 = tpu.matmul %4, %29, %cst_25 {dimension_numbers = #tpu.dot_dimension_numbers<[1], [0], [0], [1], [0, 0, 1, 1], [], []>} : vector<16x32xf32>, vector<32x16xf32>, vector<16x16xf32> -> vector<16x16xf32>
    %37 = arith.addf %35, %36 : vector<16x16xf32>
    %cst_26 = arith.constant dense<0.000000e+00> : vector<16x16xf32>
    %38 = tpu.matmul %6, %29, %cst_26 {dimension_numbers = #tpu.dot_dimension_numbers<[1], [0], [0], [1], [0, 0, 1, 1], [], []>} : vector<16x32xf32>, vector<32x16xf32>, vector<16x16xf32> -> vector<16x16xf32>
    %39 = vector.extract_strided_slice %38 {offsets = [0, 1], sizes = [16, 15], strides = [1, 1]} : vector<16x16xf32> to vector<16x15xf32>
    %cst_27 = arith.constant 0.000000e+00 : f32
    %40 = vector.broadcast %cst_27 : f32 to vector<16x1xf32>
    %41 = tpu.concatenate %39, %40 in 1 : vector<16x15xf32>, vector<16x1xf32> -> vector<16x16xf32>
    %42 = arith.addf %37, %41 : vector<16x16xf32>
    %43 = vector.broadcast %0 : vector<16x1xf32> to vector<16x16xf32>
    %44 = arith.addf %42, %43 : vector<16x16xf32>
    %45 = math.tanh %44 : vector<16x16xf32>
    %c1_28 = arith.constant 1 : index
    %c0_29 = arith.constant 0 : index
    %c0_30 = arith.constant 0 : index
    %46 = vector.load %arg4[%c1_28, %c0_29, %c0_30] : memref<2x16x16xf32, #tpu.memory_space<vmem>>, vector<1x16x16xf32>
    %47 = vector.shape_cast %46 : vector<1x16x16xf32> to vector<16x16xf32>
    %48 = vector.shape_cast %45 : vector<16x16xf32> to vector<1x16x16xf32>
    tpu.vector_store %arg4[%c1_28, %c0_29, %c0_30], %48 {strides = array<i32>} : memref<2x16x16xf32, #tpu.memory_space<vmem>>, vector<1x16x16xf32>,
    return
  }
  func.func @transform_0(%arg0: i32) -> (i32, i32, i32) {
    %c0_i32 = arith.constant 0 : i32
    %c0_i32_0 = arith.constant 0 : i32
    %c0_i32_1 = arith.constant 0 : i32
    return %arg0, %c0_i32, %c0_i32_0 : i32, i32, i32
  }
  func.func @transform_1(%arg0: i32) -> (i32, i32, i32) {
    %c0_i32 = arith.constant 0 : i32
    %c0_i32_0 = arith.constant 0 : i32
    %c0_i32_1 = arith.constant 0 : i32
    %c0_i32_2 = arith.constant 0 : i32
    return %c0_i32, %c0_i32_0, %c0_i32_1 : i32, i32, i32
  }
  func.func @transform_2(%arg0: i32) -> (i32, i32) {
    %c0_i32 = arith.constant 0 : i32
    %c0_i32_0 = arith.constant 0 : i32
    %c0_i32_1 = arith.constant 0 : i32
    return %c0_i32, %c0_i32_0 : i32, i32
  }
  func.func @transform_3(%arg0: i32) -> (i32, i32, i32) {
    %c0_i32 = arith.constant 0 : i32
    %c0_i32_0 = arith.constant 0 : i32
    %c0_i32_1 = arith.constant 0 : i32
    return %arg0, %c0_i32, %c0_i32_0 : i32, i32, i32
  }
}

</mosaic_0001>

<llo_original>
// kernel: tpu_custom_call.1
$region0: #{tpu_custom_call.1}
  #allocation0 [shape = 'u32[]', space=smem, size = 0x4, offset = 0x4, fixed_abs, tag = 'smem constant byte address 0x4 - core index']
  #allocation1 [shape = 'u32[144,128]{1,0:T(1,128)}', space=vmem, size = 0x12000, scoped, tag = 'internal scratch']
  %s0 = inlined_call_operand.vmem [shape: f32[2,32,16], index: 0, kind: input, shape index: {}]
  %s1 = inlined_call_operand.vmem [shape: f32[3,16,32], index: 1, kind: input, shape index: {}]
  %s2 = inlined_call_operand.vmem [shape: f32[16,1], index: 2, kind: input, shape index: {}]
  %s3 = inlined_call_operand.hbm [shape: f32[2,16,16], index: 3, kind: output, shape index: {}]
  %s4 = sld [smem:[#allocation0]]
  $region22: #{tpu_custom_call.1} parent=0
    _
  %s6 = ssub.s32 1, %s4
  %s7 = scalar_select 0, %s6, %s4
  $region1: #{tpu_custom_call.1} parent=0
    #allocation2 [shape = 'u8[16384]{0}', space=vmem, size = 0x4000, scoped, tag = 'output window, operand 0, single buffered']
    #allocation3 [shape = 's32[1]{0}', space=sflag, size = 0x4, scoped, tag = 'scoped memory for tpu_custom_call.1']
    %8 = vsyncpa [#allocation3], 0
    // Predicated region
    $region2: #{tpu_custom_call.1} parent=1 // pred_check
      _
    $region3: #{tpu_custom_call.1} parent=1 // pred_check_branch
      %10 = sbr.rel (0) target = $region5
    $region4: #{tpu_custom_call.1} parent=1 // pred_region
      _
    $region5: #{tpu_custom_call.1} parent=1 // pred_fallthru
      _
    // Predicated region
    $region6: #{tpu_custom_call.1} parent=1 // pred_check
      _
    $region7: #{tpu_custom_call.1} parent=1 // pred_check_branch
      %12 = sbr.rel (0) target = $region9
    $region8: #{tpu_custom_call.1} parent=1 // pred_region
      _
    $region9: #{tpu_custom_call.1} parent=1 // pred_fallthru
      _
    // Predicated region
    $region10: #{tpu_custom_call.1} parent=1 // pred_check
      _
    $region11: #{tpu_custom_call.1} parent=1 // pred_check_branch
      %14 = sbr.rel (0) target = $region13
    $region12: #{tpu_custom_call.1} parent=1 // pred_region
      _
    $region13: #{tpu_custom_call.1} parent=1 // pred_fallthru
      _
    %v15 = vld [vmem:[%s2] sm:$0xff]
    %v16 = vld [vmem:[%s2 + $0x8] sm:$0xff]
    %v17 = vld [vmem:[%s1] sm:$0xff]
    %v18 = vld [vmem:[%s1 + $0x8] sm:$0xff]
    %s19 = scalar_lea.vmem %s1, 16
    %v20 = vld [vmem:[%s19] sm:$0xff]
    %v21 = vld [vmem:[%s19 + $0x8] sm:$0xff]
    %s22 = scalar_lea.vmem %s1, 32
    %v23 = vld [vmem:[%s22] sm:$0xff]
    %v24 = vld [vmem:[%s22 + $0x8] sm:$0xff]
    %v25 = vld [vmem:[%s0] sm:$0xff]
    %v26 = vld [vmem:[%s0 + $0x8] sm:$0xff]
    %v27 = vld [vmem:[%s0 + $0x10] sm:$0xff]
    %v28 = vld [vmem:[%s0 + $0x18] sm:$0xff]
    %vm29 = vcmask 261120
    %v31 = vsel %vm29, %v17, 0
    %v34 = vsel %vm29, %v18, 0
    %36 = vmatprep.subr.mxu0 0.0
    %37 = vmatpush1.msra.mxu0 %v25
    %38 = vmatprep.subr.mxu0 0.0
    %39 = vmatpush1.msra.mxu0 %v26
    %40 = vmatprep.subr.mxu0 0.0
    %41 = vmatpush1.msra.mxu0 %v27
    %42 = vmatprep.subr.mxu0 0.0
    %43 = vmatpush1.msra.mxu0 %v28
    %44 = vmatprep.subr.mxu0 0.0
    %45 = vmatpush1.msra.mxu0 0.0
    %46 = vmatprep.subr.mxu0 0.0
    %47 = vmatpush1.msra.mxu0 0.0
    %48 = vmatprep.subr.mxu0 0.0
    %49 = vmatpush1.msra.mxu0 0.0
    %50 = vmatprep.subr.mxu0 0.0
    %51 = vmatpush1.msra.mxu0 0.0
    %52 = vmatprep.subr.mxu0 0.0
    %53 = vmatpush1.msra.mxu0 0.0
    %54 = vmatprep.subr.mxu0 0.0
    %55 = vmatpush1.msra.mxu0 0.0
    %56 = vmatprep.subr.mxu0 0.0
    %57 = vmatpush1.msra.mxu0 0.0
    %58 = vmatprep.subr.mxu0 0.0
    %59 = vmatpush1.msra.mxu0 0.0
    %60 = vmatprep.subr.mxu0 0.0
    %61 = vmatpush1.msra.mxu0 0.0
    %62 = vmatprep.subr.mxu0 0.0
    %63 = vmatpush1.msra.mxu0 0.0
    %64 = vmatprep.subr.mxu0 0.0
    %65 = vmatpush1.msra.mxu0 0.0
    %66 = vmatprep.subr.mxu0 0.0
    %67 = vmatpush1.msra.mxu0 0.0
    %68 = vmatprep.subr.mxu0 0.0
    %69 = vmatpush1.msra.mxu0 0.0
    %70 = vmatprep.subr.mxu0 0.0
    %71 = vmatpush1.msra.mxu0 0.0
    %72 = vmatprep.subr.mxu0 0.0
    %73 = vmatpush1.msra.mxu0 0.0
    %74 = vmatprep.subr.mxu0 0.0
    %75 = vmatpush1.msra.mxu0 0.0
    %76 = vmatprep.subr.mxu0 0.0
    %77 = vmatpush1.msra.mxu0 0.0
    %78 = vmatprep.subr.mxu0 0.0
    %79 = vmatpush1.msra.mxu0 0.0
    %80 = vmatprep.subr.mxu0 0.0
    %81 = vmatpush1.msra.mxu0 0.0
    %82 = vmatprep.subr.mxu0 0.0
    %83 = vmatpush1.msra.mxu0 0.0
    %84 = vmatprep.subr.mxu0 0.0
    %85 = vmatpush1.msra.mxu0 0.0
    %86 = vmatprep.subr.mxu0 0.0
    %87 = vmatpush1.msra.mxu0 0.0
    %88 = vmatprep.subr.mxu0 0.0
    %89 = vmatpush1.msra.mxu0 0.0
    %90 = vmatprep.subr.mxu0 0.0
    %91 = vmatpush1.msra.mxu0 0.0
    %92 = vmatprep.subr.mxu0 0.0
    %93 = vmatpush1.msra.mxu0 0.0
    %94 = vmatprep.subr.mxu0 0.0
    %95 = vmatpush1.msra.mxu0 0.0
    %96 = vmatprep.subr.mxu0 0.0
    %97 = vmatpush1.msra.mxu0 0.0
    %98 = vmatprep.subr.mxu0 0.0
    %99 = vmatpush1.msra.mxu0 0.0
    %100 = vmatprep.mubr.f32.mxu0 0.0
    %101 = vmatmul.mubr.f32.gmra.mrb[0].mxu0 %v31
    %v102 = vpop.f32.mrb[0].mxu0
    %v103 = vadd.f32 0.0, %v102
    %v104 = vpop.f32.mrb[0].mxu0
    %105 = vmatprep.mubr.f32.mxu0 0.0
    %106 = vmatmul.mubr.f32.gmra.mrb[0].mxu0 %v34
    %v107 = vpop.f32.mrb[0].mxu0
    %v108 = vadd.f32 0.0, %v107
    %v109 = vpop.f32.mrb[0].mxu0
    %110 = vdwg.mxu0
    %113 = vrot.lane.b32.xlu0 %v103, 1
    %v114 = vpop.permute.xlu0 %113
    %115 = vrot.lane.b32.xlu0 %v108, 1
    %v116 = vpop.permute.xlu0 %115
    %vm119 = vcmask 7168
    %v120 = vsel %vm119, 0.0, %v114
    %v121 = vsel %vm119, 0.0, %v116
    %v122 = vadd.f32 %v120, 0.0
    %v123 = vadd.f32 %v121, 0.0
    %v125 = vsel %vm29, %v20, 0
    %v128 = vsel %vm29, %v21, 0
    %130 = vmatprep.subr.mxu0 0.0
    %131 = vmatpush1.msra.mxu0 %v25
    %132 = vmatprep.subr.mxu0 0.0
    %133 = vmatpush1.msra.mxu0 %v26
    %134 = vmatprep.subr.mxu0 0.0
    %135 = vmatpush1.msra.mxu0 %v27
    %136 = vmatprep.subr.mxu0 0.0
    %137 = vmatpush1.msra.mxu0 %v28
    %138 = vmatprep.subr.mxu0 0.0
    %139 = vmatpush1.msra.mxu0 0.0
    %140 = vmatprep.subr.mxu0 0.0
    %141 = vmatpush1.msra.mxu0 0.0
    %142 = vmatprep.subr.mxu0 0.0
    %143 = vmatpush1.msra.mxu0 0.0
    %144 = vmatprep.subr.mxu0 0.0
    %145 = vmatpush1.msra.mxu0 0.0
    %146 = vmatprep.subr.mxu0 0.0
    %147 = vmatpush1.msra.mxu0 0.0
    %148 = vmatprep.subr.mxu0 0.0
    %149 = vmatpush1.msra.mxu0 0.0
    %150 = vmatprep.subr.mxu0 0.0
    %151 = vmatpush1.msra.mxu0 0.0
    %152 = vmatprep.subr.mxu0 0.0
    %153 = vmatpush1.msra.mxu0 0.0
    %154 = vmatprep.subr.mxu0 0.0
    %155 = vmatpush1.msra.mxu0 0.0
    %156 = vmatprep.subr.mxu0 0.0
    %157 = vmatpush1.msra.mxu0 0.0
    %158 = vmatprep.subr.mxu0 0.0
    %159 = vmatpush1.msra.mxu0 0.0
    %160 = vmatprep.subr.mxu0 0.0
    %161 = vmatpush1.msra.mxu0 0.0
    %162 = vmatprep.subr.mxu0 0.0
    %163 = vmatpush1.msra.mxu0 0.0
    %164 = vmatprep.subr.mxu0 0.0
    %165 = vmatpush1.msra.mxu0 0.0
    %166 = vmatprep.subr.mxu0 0.0
    %167 = vmatpush1.msra.mxu0 0.0
    %168 = vmatprep.subr.mxu0 0.0
    %169 = vmatpush1.msra.mxu0 0.0
    %170 = vmatprep.subr.mxu0 0.0
    %171 = vmatpush1.msra.mxu0 0.0
    %172 = vmatprep.subr.mxu0 0.0
    %173 = vmatpush1.msra.mxu0 0.0
    %174 = vmatprep.subr.mxu0 0.0
    %175 = vmatpush1.msra.mxu0 0.0
    %176 = vmatprep.subr.mxu0 0.0
    %177 = vmatpush1.msra.mxu0 0.0
    %178 = vmatprep.subr.mxu0 0.0
    %179 = vmatpush1.msra.mxu0 0.0
    %180 = vmatprep.subr.mxu0 0.0
    %181 = vmatpush1.msra.mxu0 0.0
    %182 = vmatprep.subr.mxu0 0.0
    %183 = vmatpush1.msra.mxu0 0.0
    %184 = vmatprep.subr.mxu0 0.0
    %185 = vmatpush1.msra.mxu0 0.0
    %186 = vmatprep.subr.mxu0 0.0
    %187 = vmatpush1.msra.mxu0 0.0
    %188 = vmatprep.subr.mxu0 0.0
    %189 = vmatpush1.msra.mxu0 0.0
    %190 = vmatprep.subr.mxu0 0.0
    %191 = vmatpush1.msra.mxu0 0.0
    %192 = vmatprep.subr.mxu0 0.0
    %193 = vmatpush1.msra.mxu0 0.0
    %194 = vmatprep.mubr.f32.mxu0 0.0
    %195 = vmatmul.mubr.f32.gmra.mrb[0].mxu0 %v125
    %v196 = vpop.f32.mrb[0].mxu0
    %v197 = vadd.f32 0.0, %v196
    %v198 = vpop.f32.mrb[0].mxu0
    %199 = vmatprep.mubr.f32.mxu0 0.0
    %200 = vmatmul.mubr.f32.gmra.mrb[0].mxu0 %v128
    %v201 = vpop.f32.mrb[0].mxu0
    %v202 = vadd.f32 0.0, %v201
    %v203 = vpop.f32.mrb[0].mxu0
    %204 = vdwg.mxu0
    %v205 = vadd.f32 %v122, %v197
    %v206 = vadd.f32 %v123, %v202
    %v208 = vsel %vm29, %v23, 0
    %v211 = vsel %vm29, %v24, 0
    %213 = vmatprep.subr.mxu0 0.0
    %214 = vmatpush1.msra.mxu0 %v25
    %215 = vmatprep.subr.mxu0 0.0
    %216 = vmatpush1.msra.mxu0 %v26
    %217 = vmatprep.subr.mxu0 0.0
    %218 = vmatpush1.msra.mxu0 %v27
    %219 = vmatprep.subr.mxu0 0.0
    %220 = vmatpush1.msra.mxu0 %v28
    %221 = vmatprep.subr.mxu0 0.0
    %222 = vmatpush1.msra.mxu0 0.0
    %223 = vmatprep.subr.mxu0 0.0
    %224 = vmatpush1.msra.mxu0 0.0
    %225 = vmatprep.subr.mxu0 0.0
    %226 = vmatpush1.msra.mxu0 0.0
    %227 = vmatprep.subr.mxu0 0.0
    %228 = vmatpush1.msra.mxu0 0.0
    %229 = vmatprep.subr.mxu0 0.0
    %230 = vmatpush1.msra.mxu0 0.0
    %231 = vmatprep.subr.mxu0 0.0
    %232 = vmatpush1.msra.mxu0 0.0
    %233 = vmatprep.subr.mxu0 0.0
    %234 = vmatpush1.msra.mxu0 0.0
    %235 = vmatprep.subr.mxu0 0.0
    %236 = vmatpush1.msra.mxu0 0.0
    %237 = vmatprep.subr.mxu0 0.0
    %238 = vmatpush1.msra.mxu0 0.0
    %239 = vmatprep.subr.mxu0 0.0
    %240 = vmatpush1.msra.mxu0 0.0
    %241 = vmatprep.subr.mxu0 0.0
    %242 = vmatpush1.msra.mxu0 0.0
    %243 = vmatprep.subr.mxu0 0.0
    %244 = vmatpush1.msra.mxu0 0.0
    %245 = vmatprep.subr.mxu0 0.0
    %246 = vmatpush1.msra.mxu0 0.0
    %247 = vmatprep.subr.mxu0 0.0
    %248 = vmatpush1.msra.mxu0 0.0
    %249 = vmatprep.subr.mxu0 0.0
    %250 = vmatpush1.msra.mxu0 0.0
    %251 = vmatprep.subr.mxu0 0.0
    %252 = vmatpush1.msra.mxu0 0.0
    %253 = vmatprep.subr.mxu0 0.0
    %254 = vmatpush1.msra.mxu0 0.0
    %255 = vmatprep.subr.mxu0 0.0
    %256 = vmatpush1.msra.mxu0 0.0
    %257 = vmatprep.subr.mxu0 0.0
    %258 = vmatpush1.msra.mxu0 0.0
    %259 = vmatprep.subr.mxu0 0.0
    %260 = vmatpush1.msra.mxu0 0.0
    %261 = vmatprep.subr.mxu0 0.0
    %262 = vmatpush1.msra.mxu0 0.0
    %263 = vmatprep.subr.mxu0 0.0
    %264 = vmatpush1.msra.mxu0 0.0
    %265 = vmatprep.subr.mxu0 0.0
    %266 = vmatpush1.msra.mxu0 0.0
    %267 = vmatprep.subr.mxu0 0.0
    %268 = vmatpush1.msra.mxu0 0.0
    %269 = vmatprep.subr.mxu0 0.0
    %270 = vmatpush1.msra.mxu0 0.0
    %271 = vmatprep.subr.mxu0 0.0
    %272 = vmatpush1.msra.mxu0 0.0
    %273 = vmatprep.subr.mxu0 0.0
    %274 = vmatpush1.msra.mxu0 0.0
    %275 = vmatprep.subr.mxu0 0.0
    %276 = vmatpush1.msra.mxu0 0.0
    %277 = vmatprep.mubr.f32.mxu0 0.0
    %278 = vmatmul.mubr.f32.gmra.mrb[0].mxu0 %v208
    %v279 = vpop.f32.mrb[0].mxu0
    %v280 = vadd.f32 0.0, %v279
    %v281 = vpop.f32.mrb[0].mxu0
    %282 = vmatprep.mubr.f32.mxu0 0.0
    %283 = vmatmul.mubr.f32.gmra.mrb[0].mxu0 %v211
    %v284 = vpop.f32.mrb[0].mxu0
    %v285 = vadd.f32 0.0, %v284
    %v286 = vpop.f32.mrb[0].mxu0
    %287 = vdwg.mxu0
    %290 = vrot.lane.b32.xlu0 %v280, 127
    %v291 = vpop.permute.xlu0 %290
    %292 = vrot.lane.b32.xlu0 %v285, 127
    %v293 = vpop.permute.xlu0 %292
    %vm296 = vcmask 121856
    %v297 = vsel %vm296, %v291, 0.0
    %v298 = vsel %vm296, %v293, 0.0
    %v299 = vadd.f32 %v205, %v297
    %v300 = vadd.f32 %v206, %v298
    %302 = vset.pattern.permute.xlu0 0
    %303 = vperm.xlu0 %302, %v15
    %v304 = vpop.permute.xlu0 %303
    %307 = vset.pattern.permute.xlu0 0
    %308 = vperm.xlu0 %307, %v16
    %v309 = vpop.permute.xlu0 %308
    %v311 = vadd.f32 %v299, %v304
    %v312 = vadd.f32 %v300, %v309
    %v313 = vtanh.pop %v311
    %v314 = vtanh.pop %v312
    %vm315 = vcmask 130048
    %316 = vst.msk [vmem:[#allocation2] sm:$0xff] %vm315, %v313
    %317 = vst.msk [vmem:[#allocation2 + $0x8] sm:$0xff] %vm315, %v314
    %s318 = scalar_lea.vmem %s0, 32
    %v319 = vld [vmem:[%s318] sm:$0xff]
    %v320 = vld [vmem:[%s318 + $0x8] sm:$0xff]
    %v321 = vld [vmem:[%s318 + $0x10] sm:$0xff]
    %v322 = vld [vmem:[%s318 + $0x18] sm:$0xff]
    %323 = vmatprep.subr.mxu0 0.0
    %324 = vmatpush1.msra.mxu0 %v319
    %325 = vmatprep.subr.mxu0 0.0
    %326 = vmatpush1.msra.mxu0 %v320
    %327 = vmatprep.subr.mxu0 0.0
    %328 = vmatpush1.msra.mxu0 %v321
    %329 = vmatprep.subr.mxu0 0.0
    %330 = vmatpush1.msra.mxu0 %v322
    %331 = vmatprep.subr.mxu0 0.0
    %332 = vmatpush1.msra.mxu0 0.0
    %333 = vmatprep.subr.mxu0 0.0
    %334 = vmatpush1.msra.mxu0 0.0
    %335 = vmatprep.subr.mxu0 0.0
    %336 = vmatpush1.msra.mxu0 0.0
    %337 = vmatprep.subr.mxu0 0.0
    %338 = vmatpush1.msra.mxu0 0.0
    %339 = vmatprep.subr.mxu0 0.0
    %340 = vmatpush1.msra.mxu0 0.0
    %341 = vmatprep.subr.mxu0 0.0
    %342 = vmatpush1.msra.mxu0 0.0
    %343 = vmatprep.subr.mxu0 0.0
    %344 = vmatpush1.msra.mxu0 0.0
    %345 = vmatprep.subr.mxu0 0.0
    %346 = vmatpush1.msra.mxu0 0.0
    %347 = vmatprep.subr.mxu0 0.0
    %348 = vmatpush1.msra.mxu0 0.0
    %349 = vmatprep.subr.mxu0 0.0
    %350 = vmatpush1.msra.mxu0 0.0
    %351 = vmatprep.subr.mxu0 0.0
    %352 = vmatpush1.msra.mxu0 0.0
    %353 = vmatprep.subr.mxu0 0.0
    %354 = vmatpush1.msra.mxu0 0.0
    %355 = vmatprep.subr.mxu0 0.0
    %356 = vmatpush1.msra.mxu0 0.0
    %357 = vmatprep.subr.mxu0 0.0
    %358 = vmatpush1.msra.mxu0 0.0
    %359 = vmatprep.subr.mxu0 0.0
    %360 = vmatpush1.msra.mxu0 0.0
    %361 = vmatprep.subr.mxu0 0.0
    %362 = vmatpush1.msra.mxu0 0.0
    %363 = vmatprep.subr.mxu0 0.0
    %364 = vmatpush1.msra.mxu0 0.0
    %365 = vmatprep.subr.mxu0 0.0
    %366 = vmatpush1.msra.mxu0 0.0
    %367 = vmatprep.subr.mxu0 0.0
    %368 = vmatpush1.msra.mxu0 0.0
    %369 = vmatprep.subr.mxu0 0.0
    %370 = vmatpush1.msra.mxu0 0.0
    %371 = vmatprep.subr.mxu0 0.0
    %372 = vmatpush1.msra.mxu0 0.0
    %373 = vmatprep.subr.mxu0 0.0
    %374 = vmatpush1.msra.mxu0 0.0
    %375 = vmatprep.subr.mxu0 0.0
    %376 = vmatpush1.msra.mxu0 0.0
    %377 = vmatprep.subr.mxu0 0.0
    %378 = vmatpush1.msra.mxu0 0.0
    %379 = vmatprep.subr.mxu0 0.0
    %380 = vmatpush1.msra.mxu0 0.0
    %381 = vmatprep.subr.mxu0 0.0
    %382 = vmatpush1.msra.mxu0 0.0
    %383 = vmatprep.subr.mxu0 0.0
    %384 = vmatpush1.msra.mxu0 0.0
    %385 = vmatprep.subr.mxu0 0.0
    %386 = vmatpush1.msra.mxu0 0.0
    %387 = vmatprep.mubr.f32.mxu0 0.0
    %388 = vmatmul.mubr.f32.gmra.mrb[0].mxu0 %v31
    %v389 = vpop.f32.mrb[0].mxu0
    %v390 = vadd.f32 0.0, %v389
    %v391 = vpop.f32.mrb[0].mxu0
    %392 = vmatprep.mubr.f32.mxu0 0.0
    %393 = vmatmul.mubr.f32.gmra.mrb[0].mxu0 %v34
    %v394 = vpop.f32.mrb[0].mxu0
    %v395 = vadd.f32 0.0, %v394
    %v396 = vpop.f32.mrb[0].mxu0
    %397 = vdwg.mxu0
    %400 = vrot.lane.b32.xlu0 %v390, 1
    %v401 = vpop.permute.xlu0 %400
    %402 = vrot.lane.b32.xlu0 %v395, 1
    %v403 = vpop.permute.xlu0 %402
    %v406 = vsel %vm119, 0.0, %v401
    %v407 = vsel %vm119, 0.0, %v403
    %v408 = vadd.f32 %v406, 0.0
    %v409 = vadd.f32 %v407, 0.0
    %410 = vmatprep.subr.mxu0 0.0
    %411 = vmatpush1.msra.mxu0 %v319
    %412 = vmatprep.subr.mxu0 0.0
    %413 = vmatpush1.msra.mxu0 %v320
    %414 = vmatprep.subr.mxu0 0.0
    %415 = vmatpush1.msra.mxu0 %v321
    %416 = vmatprep.subr.mxu0 0.0
    %417 = vmatpush1.msra.mxu0 %v322
    %418 = vmatprep.subr.mxu0 0.0
    %419 = vmatpush1.msra.mxu0 0.0
    %420 = vmatprep.subr.mxu0 0.0
    %421 = vmatpush1.msra.mxu0 0.0
    %422 = vmatprep.subr.mxu0 0.0
    %423 = vmatpush1.msra.mxu0 0.0
    %424 = vmatprep.subr.mxu0 0.0
    %425 = vmatpush1.msra.mxu0 0.0
    %426 = vmatprep.subr.mxu0 0.0
    %427 = vmatpush1.msra.mxu0 0.0
    %428 = vmatprep.subr.mxu0 0.0
    %429 = vmatpush1.msra.mxu0 0.0
    %430 = vmatprep.subr.mxu0 0.0
    %431 = vmatpush1.msra.mxu0 0.0
    %432 = vmatprep.subr.mxu0 0.0
    %433 = vmatpush1.msra.mxu0 0.0
    %434 = vmatprep.subr.mxu0 0.0
    %435 = vmatpush1.msra.mxu0 0.0
    %436 = vmatprep.subr.mxu0 0.0
    %437 = vmatpush1.msra.mxu0 0.0
    %438 = vmatprep.subr.mxu0 0.0
    %439 = vmatpush1.msra.mxu0 0.0
    %440 = vmatprep.subr.mxu0 0.0
    %441 = vmatpush1.msra.mxu0 0.0
    %442 = vmatprep.subr.mxu0 0.0
    %443 = vmatpush1.msra.mxu0 0.0
    %444 = vmatprep.subr.mxu0 0.0
    %445 = vmatpush1.msra.mxu0 0.0
    %446 = vmatprep.subr.mxu0 0.0
    %447 = vmatpush1.msra.mxu0 0.0
    %448 = vmatprep.subr.mxu0 0.0
    %449 = vmatpush1.msra.mxu0 0.0
    %450 = vmatprep.subr.mxu0 0.0
    %451 = vmatpush1.msra.mxu0 0.0
    %452 = vmatprep.subr.mxu0 0.0
    %453 = vmatpush1.msra.mxu0 0.0
    %454 = vmatprep.subr.mxu0 0.0
    %455 = vmatpush1.msra.mxu0 0.0
    %456 = vmatprep.subr.mxu0 0.0
    %457 = vmatpush1.msra.mxu0 0.0
    %458 = vmatprep.subr.mxu0 0.0
    %459 = vmatpush1.msra.mxu0 0.0
    %460 = vmatprep.subr.mxu0 0.0
    %461 = vmatpush1.msra.mxu0 0.0
    %462 = vmatprep.subr.mxu0 0.0
    %463 = vmatpush1.msra.mxu0 0.0
    %464 = vmatprep.subr.mxu0 0.0
    %465 = vmatpush1.msra.mxu0 0.0
    %466 = vmatprep.subr.mxu0 0.0
    %467 = vmatpush1.msra.mxu0 0.0
    %468 = vmatprep.subr.mxu0 0.0
    %469 = vmatpush1.msra.mxu0 0.0
    %470 = vmatprep.subr.mxu0 0.0
    %471 = vmatpush1.msra.mxu0 0.0
    %472 = vmatprep.subr.mxu0 0.0
    %473 = vmatpush1.msra.mxu0 0.0
    %474 = vmatprep.mubr.f32.mxu0 0.0
    %475 = vmatmul.mubr.f32.gmra.mrb[0].mxu0 %v125
    %v476 = vpop.f32.mrb[0].mxu0
    %v477 = vadd.f32 0.0, %v476
    %v478 = vpop.f32.mrb[0].mxu0
    %479 = vmatprep.mubr.f32.mxu0 0.0
    %480 = vmatmul.mubr.f32.gmra.mrb[0].mxu0 %v128
    %v481 = vpop.f32.mrb[0].mxu0
    %v482 = vadd.f32 0.0, %v481
    %v483 = vpop.f32.mrb[0].mxu0
    %484 = vdwg.mxu0
    %v485 = vadd.f32 %v408, %v477
    %v486 = vadd.f32 %v409, %v482
    %487 = vmatprep.subr.mxu0 0.0
    %488 = vmatpush1.msra.mxu0 %v319
    %489 = vmatprep.subr.mxu0 0.0
    %490 = vmatpush1.msra.mxu0 %v320
    %491 = vmatprep.subr.mxu0 0.0
    %492 = vmatpush1.msra.mxu0 %v321
    %493 = vmatprep.subr.mxu0 0.0
    %494 = vmatpush1.msra.mxu0 %v322
    %495 = vmatprep.subr.mxu0 0.0
    %496 = vmatpush1.msra.mxu0 0.0
    %497 = vmatprep.subr.mxu0 0.0
    %498 = vmatpush1.msra.mxu0 0.0
    %499 = vmatprep.subr.mxu0 0.0
    %500 = vmatpush1.msra.mxu0 0.0
    %501 = vmatprep.subr.mxu0 0.0
    %502 = vmatpush1.msra.mxu0 0.0
    %503 = vmatprep.subr.mxu0 0.0
    %504 = vmatpush1.msra.mxu0 0.0
    %505 = vmatprep.subr.mxu0 0.0
    %506 = vmatpush1.msra.mxu0 0.0
    %507 = vmatprep.subr.mxu0 0.0
    %508 = vmatpush1.msra.mxu0 0.0
    %509 = vmatprep.subr.mxu0 0.0
    %510 = vmatpush1.msra.mxu0 0.0
    %511 = vmatprep.subr.mxu0 0.0
    %512 = vmatpush1.msra.mxu0 0.0
    %513 = vmatprep.subr.mxu0 0.0
    %514 = vmatpush1.msra.mxu0 0.0
    %515 = vmatprep.subr.mxu0 0.0
    %516 = vmatpush1.msra.mxu0 0.0
    %517 = vmatprep.subr.mxu0 0.0
    %518 = vmatpush1.msra.mxu0 0.0
    %519 = vmatprep.subr.mxu0 0.0
    %520 = vmatpush1.msra.mxu0 0.0
    %521 = vmatprep.subr.mxu0 0.0
    %522 = vmatpush1.msra.mxu0 0.0
    %523 = vmatprep.subr.mxu0 0.0
    %524 = vmatpush1.msra.mxu0 0.0
    %525 = vmatprep.subr.mxu0 0.0
    %526 = vmatpush1.msra.mxu0 0.0
    %527 = vmatprep.subr.mxu0 0.0
    %528 = vmatpush1.msra.mxu0 0.0
    %529 = vmatprep.subr.mxu0 0.0
    %530 = vmatpush1.msra.mxu0 0.0
    %531 = vmatprep.subr.mxu0 0.0
    %532 = vmatpush1.msra.mxu0 0.0
    %533 = vmatprep.subr.mxu0 0.0
    %534 = vmatpush1.msra.mxu0 0.0
    %535 = vmatprep.subr.mxu0 0.0
    %536 = vmatpush1.msra.mxu0 0.0
    %537 = vmatprep.subr.mxu0 0.0
    %538 = vmatpush1.msra.mxu0 0.0
    %539 = vmatprep.subr.mxu0 0.0
    %540 = vmatpush1.msra.mxu0 0.0
    %541 = vmatprep.subr.mxu0 0.0
    %542 = vmatpush1.msra.mxu0 0.0
    %543 = vmatprep.subr.mxu0 0.0
    %544 = vmatpush1.msra.mxu0 0.0
    %545 = vmatprep.subr.mxu0 0.0
    %546 = vmatpush1.msra.mxu0 0.0
    %547 = vmatprep.subr.mxu0 0.0
    %548 = vmatpush1.msra.mxu0 0.0
    %549 = vmatprep.subr.mxu0 0.0
    %550 = vmatpush1.msra.mxu0 0.0
    %551 = vmatprep.mubr.f32.mxu0 0.0
    %552 = vmatmul.mubr.f32.gmra.mrb[0].mxu0 %v208
    %v553 = vpop.f32.mrb[0].mxu0
    %v554 = vadd.f32 0.0, %v553
    %v555 = vpop.f32.mrb[0].mxu0
    %556 = vmatprep.mubr.f32.mxu0 0.0
    %557 = vmatmul.mubr.f32.gmra.mrb[0].mxu0 %v211
    %v558 = vpop.f32.mrb[0].mxu0
    %v559 = vadd.f32 0.0, %v558
    %v560 = vpop.f32.mrb[0].mxu0
    %561 = vdwg.mxu0
    %564 = vrot.lane.b32.xlu0 %v554, 127
    %v565 = vpop.permute.xlu0 %564
    %566 = vrot.lane.b32.xlu0 %v559, 127
    %v567 = vpop.permute.xlu0 %566
    %v570 = vsel %vm296, %v565, 0.0
    %v571 = vsel %vm296, %v567, 0.0
    %v572 = vadd.f32 %v485, %v570
    %v573 = vadd.f32 %v486, %v571
    %v574 = vadd.f32 %v572, %v304
    %v575 = vadd.f32 %v573, %v309
    %v576 = vtanh.pop %v574
    %v577 = vtanh.pop %v575
    %s578 = scalar_lea.vmem [#allocation2], 16
    %579 = vst.msk [vmem:[%s578] sm:$0xff] %vm315, %v576
    %580 = vst.msk [vmem:[%s578 + $0x8] sm:$0xff] %vm315, %v577
    // Predicated region
    $region14: #{tpu_custom_call.1} parent=1 // pred_check
      _
    $region15: #{tpu_custom_call.1} parent=1 // pred_check_branch
      %582 = sbr.rel (0) target = $region17
    $region16: #{tpu_custom_call.1} parent=1 // pred_region
      %s584 = ssub.s32 512, 512
      %585 = vsyncadd [#allocation3], %s584
      %s586 = sshll.u32 [#allocation2], 4
      %s587 = int_to_ptr.vmem [resolvable:$true] %s586
      %592 = dma.vmem_to_hbm [thread:$0]  %s587, 512, %s3, [#allocation3], 128, 128, 8
    $region17: #{tpu_custom_call.1} parent=1 // pred_fallthru
      _
    // Predicated region
    $region18: #{tpu_custom_call.1} parent=1 // pred_check
      _
    $region19: #{tpu_custom_call.1} parent=1 // pred_check_branch
      %594 = sbr.rel (0) target = $region21
    $region20: #{tpu_custom_call.1} parent=1 // pred_region
      %595 = dma.done [#allocation3], 512
    $region21: #{tpu_custom_call.1} parent=1 // pred_fallthru
      _
    %596 = vsyncpa [#allocation3], 1

</llo_original>
